<compile_context>
chip_gen: v7x
topology: tpu7x:2x2x1
jax: 0.10.0
libtpu: 0.0.40
codegen_flags: <defaults>
</compile_context>

<pallas_src>
import functools

import jax
import jax.numpy as jnp
from jax import lax
from jax.experimental import pallas as pl
from jax.experimental.pallas import tpu as pltpu


# --------------------------------------------------------------------------
# Kernel 1: GCN conv + ReLU, row-blocked over the output.
#   H[I] = relu( dinv[I]*(A^T @ ys)[I] + dinv[I]*ys[I] + b ),  ys = dinv*(X@W)
# Emits [H | H^2] (bf16) so the gate kernel needs a single matmul operand.
# --------------------------------------------------------------------------
def g2_conv_kernel(agg_row_ref, ys_full_ref, dinv_blk_ref, b_ref, hcat_ref,
                   *, row_block, h_pad):
    # Neighbor aggregation on the MXU (bf16 x bf16, f32 accumulation).
    agg = jnp.dot(agg_row_ref[...], ys_full_ref[...],
                  preferred_element_type=jnp.float32)            # (TM, Hp)

    # Self-loop term: slice this row block out of the already-resident ys.
    row_start = pl.multiple_of(pl.program_id(0) * row_block, row_block)
    ys_blk = ys_full_ref[pl.ds(row_start, row_block), :].astype(jnp.float32)

    dinv = dinv_blk_ref[...]                                     # (TM, 1) f32
    h = jnp.maximum(dinv * agg + dinv * ys_blk + b_ref[...], 0.0)

    # Lane-dense stores (h_pad is a multiple of 128).
    hcat_ref[:, 0:h_pad] = h.astype(hcat_ref.dtype)
    hcat_ref[:, h_pad:2 * h_pad] = (h * h).astype(hcat_ref.dtype)


# --------------------------------------------------------------------------
# Kernel 2: gate = tanh( scatter_mean_src |H[src]-H[dst]|^p )
# p==2 closed form via one MXU matmul against [H | H^2]:
#   sum_j c_ij (H_i-H_j)^2 = outdeg_i*H_i^2 - 2*H_i*(A@H)_i + (A@H^2)_i
# --------------------------------------------------------------------------
def g2_gate_kernel(a_row_ref, hcat_full_ref, invdeg_blk_ref, out_ref,
                   *, p, row_block, h_pad):
    row_start = pl.multiple_of(pl.program_id(0) * row_block, row_block)
    hi = hcat_full_ref[pl.ds(row_start, row_block),
                       pl.ds(0, h_pad)].astype(jnp.float32)      # (TM, Hp)
    invdeg = invdeg_blk_ref[...]                                 # (TM, 1) f32

    if p == 2.0:
        s = jnp.dot(a_row_ref[...], hcat_full_ref[...],
                    preferred_element_type=jnp.float32)          # (TM, 2*Hp)
        s1 = s[:, 0:h_pad]                                       # A @ H
        s2 = s[:, h_pad:2 * h_pad]                               # A @ H^2
        # outdeg*invdeg == 1 for any node with an outgoing edge; zero-out-degree
        # rows (invdeg == 0) must produce tanh(0) = 0 like torch_scatter 'mean'.
        self_term = jnp.where(invdeg > 0.0, hi * hi, 0.0)
        g = self_term + invdeg * (s2 - 2.0 * hi * s1)
        out_ref[...] = jnp.tanh(g)
    else:
        # General-p fallback (module default is p=2.0; this path is slow).
        h_full = hcat_full_ref[:, pl.ds(0, h_pad)].astype(jnp.float32)

        @pl.loop(0, row_block)
        def _(r):
            hr = lax.dynamic_slice_in_dim(hi, r, 1, axis=0)      # (1, Hp)
            dp = jnp.power(jnp.abs(hr - h_full), p)              # (n, Hp)
            row = a_row_ref[pl.ds(r, 1), :].astype(jnp.float32)  # (1, n)
            gi = jnp.dot(row, dp, preferred_element_type=jnp.float32)
            inv_r = lax.dynamic_slice_in_dim(invdeg, r, 1, axis=0)
            out_ref[pl.ds(r, 1), :] = jnp.tanh(gi * inv_r)


def g2_forward(x, edge_index, w, b, p=2.0, row_block=128,
               mxu_dtype=jnp.bfloat16):
    n, in_dim = x.shape
    hidden = w.shape[1]
    n_pad = row_block * pl.cdiv(n, row_block)
    h_pad = 128 * pl.cdiv(hidden, 128)
    num_blocks = n_pad // row_block
    isz = jnp.dtype(mxu_dtype).itemsize

    src, dst = edge_index[0], edge_index[1]

    # ---- glue (plain XLA): dense edge-count matrices, degrees, hoisted ys.
    # agg_mat[i, j] = #edges (j -> i)  (GCN aggregation, standard LHS rows)
    # a_src[i, j]   = #edges (i -> j)  (gate scatter over src, LHS rows)
    agg_mat = jnp.zeros((n_pad, n_pad), jnp.float32).at[dst, src].add(1.0)
    a_src = jnp.zeros((n_pad, n_pad), jnp.float32).at[src, dst].add(1.0)

    deg = agg_mat.sum(axis=1, keepdims=True) + 1.0   # in-degree + self-loop
    dinv = lax.rsqrt(deg)                            # (n_pad, 1) f32
    out_deg = a_src.sum(axis=1, keepdims=True)       # (n_pad, 1)
    invdeg = jnp.where(out_deg > 0.0, 1.0 / jnp.maximum(out_deg, 1.0), 0.0)

    x_p = jnp.zeros((n_pad, in_dim), jnp.float32).at[:n, :].set(x)
    w_p = jnp.zeros((in_dim, h_pad), jnp.float32).at[:, :hidden].set(w)
    b_p = jnp.zeros((1, h_pad), jnp.float32).at[:, :hidden].set(b)

    # Hoisted once (previously recomputed for all nodes on every grid step).
    ys = (dinv * (x_p @ w_p)).astype(mxu_dtype)      # (n_pad, h_pad)
    agg_mat = agg_mat.astype(mxu_dtype)              # integer counts: exact
    a_src = a_src.astype(mxu_dtype)

    cparams = pltpu.CompilerParams(
        dimension_semantics=("parallel",),
        # 48 MiB: above the 32 MiB scoped default (v5e/v6e), under v7x's 64 MiB.
        vmem_limit_bytes=48 * 1024 * 1024,
    )

    # ---- kernel 1: [H | H^2] = f(relu(GCNConv(X)))
    flops_conv = 2 * n_pad * n_pad * h_pad + 8 * n_pad * h_pad
    bytes_conv = isz * (n_pad * n_pad + n_pad * h_pad + n_pad * 2 * h_pad) \
        + 4 * (n_pad + h_pad)
    h_cat = pl.pallas_call(
        functools.partial(g2_conv_kernel, row_block=row_block, h_pad=h_pad),
        out_shape=jax.ShapeDtypeStruct((n_pad, 2 * h_pad), mxu_dtype),
        grid=(num_blocks,),
        in_specs=[
            pl.BlockSpec((row_block, n_pad), lambda i: (i, 0)),   # A^T row block
            pl.BlockSpec((n_pad, h_pad), lambda i: (0, 0)),       # ys (resident)
            pl.BlockSpec((row_block, 1), lambda i: (i, 0)),       # dinv row block
            pl.BlockSpec((1, h_pad), lambda i: (0, 0)),           # bias
        ],
        out_specs=pl.BlockSpec((row_block, 2 * h_pad), lambda i: (i, 0)),
        compiler_params=cparams,
        cost_estimate=pl.CostEstimate(flops=flops_conv, transcendentals=0,
                                      bytes_accessed=bytes_conv),
    )(agg_mat, ys, dinv, b_p)

    # ---- kernel 2: gate = tanh(scatter_mean_src |H[src]-H[dst]|^p)
    flops_gate = 2 * n_pad * n_pad * (2 * h_pad) + 8 * n_pad * h_pad
    bytes_gate = isz * (n_pad * n_pad + n_pad * 2 * h_pad) \
        + 4 * (n_pad + n_pad * h_pad)
    gate = pl.pallas_call(
        functools.partial(g2_gate_kernel, p=p, row_block=row_block,
                          h_pad=h_pad),
        out_shape=jax.ShapeDtypeStruct((n_pad, h_pad), jnp.float32),
        grid=(num_blocks,),
        in_specs=[
            pl.BlockSpec((row_block, n_pad), lambda i: (i, 0)),   # A row block
            pl.BlockSpec((n_pad, 2 * h_pad), lambda i: (0, 0)),   # [H|H^2] resident
            pl.BlockSpec((row_block, 1), lambda i: (i, 0)),       # 1/out_deg block
        ],
        out_specs=pl.BlockSpec((row_block, h_pad), lambda i: (i, 0)),
        compiler_params=cparams,
        cost_estimate=pl.CostEstimate(flops=flops_gate,
                                      transcendentals=n_pad * h_pad,
                                      bytes_accessed=bytes_gate),
    )(a_src, h_cat, invdeg)

    return gate[:n, :hidden]


def g2_reference(x, edge_index, w, b, p=2.0):
    """Pure-JAX f32 reference mirroring the PyTorch semantics."""
    n = x.shape[0]
    src, dst = edge_index[0], edge_index[1]
    a_count = jnp.zeros((n, n), jnp.float32).at[src, dst].add(1.0)
    a_agg = a_count.T + jnp.eye(n, dtype=jnp.float32)
    deg = a_agg.sum(axis=1)
    dinv = 1.0 / jnp.sqrt(jnp.maximum(deg, 1.0))
    a_norm = dinv[:, None] * a_agg * dinv[None, :]
    h = jnp.maximum(a_norm @ (x @ w) + b, 0.0)               # GCN conv + ReLU
    diff = jnp.abs(h[src] - h[dst]) ** p                     # (E, hidden)
    sums = jnp.zeros((n, h.shape[1]), jnp.float32).at[src].add(diff)
    cnts = jnp.zeros((n,), jnp.float32).at[src].add(1.0)
    return jnp.tanh(sums / jnp.maximum(cnts, 1.0)[:, None])


if __name__ == "__main__":
    n_nodes, in_features, hidden, n_edges = 200, 8, 32, 600
    key = jax.random.PRNGKey(0)
    kx, ke, kw, kb = jax.random.split(key, 4)

    x = jax.random.normal(kx, (n_nodes, in_features), dtype=jnp.float32)
    edge_index = jax.random.randint(ke, (2, n_edges), 0, n_nodes,
                                    dtype=jnp.int32)
    w = 0.3 * jax.random.normal(kw, (in_features, hidden), dtype=jnp.float32)
    b = 0.1 * jax.random.normal(kb, (1, hidden), dtype=jnp.float32)

    ref = g2_reference(x, edge_index, w, b, p=2.0)

    # f32 MXU path: should match the f32 reference tightly.
    out_f32 = g2_forward(x, edge_index, w, b, p=2.0, row_block=128,
                         mxu_dtype=jnp.float32)
    out_f32 = jax.block_until_ready(out_f32)
    assert out_f32.shape == (n_nodes, hidden)
    assert jnp.allclose(out_f32, ref, rtol=1e-3, atol=1e-3), "f32 mismatch"

    # bf16 MXU path (production setting): bf16 operand rounding, f32 accumulate
    # and f32 combine -> looser tolerance vs the pure-f32 reference.
    out_bf16 = g2_forward(x, edge_index, w, b, p=2.0, row_block=128,
                          mxu_dtype=jnp.bfloat16)
    out_bf16 = jax.block_until_ready(out_bf16)
    assert out_bf16.shape == (n_nodes, hidden)
    assert jnp.allclose(out_bf16, ref, rtol=2.5e-2, atol=2.5e-2), "bf16 mismatch"

    print("KERNEL_OK")
</pallas_src>

<mosaic_0001>
module attributes {stable_mosaic.version = 11 : i64} {
  func.func @g2_conv_kernel(%arg0: i32, %arg1: memref<128x256xf32, #tpu.memory_space<vmem>>, %arg2: memref<256x128xf32, #tpu.memory_space<vmem>>, %arg3: memref<128x1xf32, #tpu.memory_space<vmem>>, %arg4: memref<1x128xf32, #tpu.memory_space<vmem>>, %arg5: memref<128x256xf32, #tpu.memory_space<vmem>>) attributes {dimension_semantics = [#tpu.dimension_semantics<parallel>], iteration_bounds = array<i64: 2>, scalar_prefetch = 0 : i64, scratch_operands = 0 : i64, tpu.core_type = #tpu.core_type<tc>, window_params = [{transform_indices = @transform_0, window_bounds = array<i64: 128, 256>}, {pipeline_mode = #tpu.pipeline_mode<synchronous>, transform_indices = @transform_1, window_bounds = array<i64: 256, 128>}, {transform_indices = @transform_2, window_bounds = array<i64: 128, 1>}, {pipeline_mode = #tpu.pipeline_mode<synchronous>, transform_indices = @transform_3, window_bounds = array<i64: 1, 128>}, {transform_indices = @transform_4, window_bounds = array<i64: 128, 256>}]} {
    %c0 = arith.constant 0 : index
    %c0_0 = arith.constant 0 : index
    %0 = vector.load %arg1[%c0, %c0_0] : memref<128x256xf32, #tpu.memory_space<vmem>>, vector<128x256xf32>
    %c0_1 = arith.constant 0 : index
    %c0_2 = arith.constant 0 : index
    %1 = vector.load %arg2[%c0_1, %c0_2] : memref<256x128xf32, #tpu.memory_space<vmem>>, vector<256x128xf32>
    %cst = arith.constant dense<0.000000e+00> : vector<128x128xf32>
    %2 = tpu.matmul %0, %1, %cst {dimension_numbers = #tpu.dot_dimension_numbers<[1], [0], [0], [1], [0, 0, 1, 1], [], []>} : vector<128x256xf32>, vector<256x128xf32>, vector<128x128xf32> -> vector<128x128xf32>
    %c128_i32 = arith.constant 128 : i32
    %3 = arith.muli %arg0, %c128_i32 : i32
    %4 = tpu.assume_multiple %3, 128 : i32
    %5 = arith.index_cast %4 : i32 to index
    %c0_3 = arith.constant 0 : index
    %6 = vector.load %arg2[%5, %c0_3] : memref<256x128xf32, #tpu.memory_space<vmem>>, vector<128x128xf32>
    %c0_4 = arith.constant 0 : index
    %c0_5 = arith.constant 0 : index
    %7 = vector.load %arg3[%c0_4, %c0_5] : memref<128x1xf32, #tpu.memory_space<vmem>>, vector<128x1xf32>
    %8 = vector.broadcast %7 : vector<128x1xf32> to vector<128x128xf32>
    %9 = arith.mulf %8, %2 : vector<128x128xf32>
    %10 = vector.broadcast %7 : vector<128x1xf32> to vector<128x128xf32>
    %11 = arith.mulf %10, %6 : vector<128x128xf32>
    %12 = arith.addf %9, %11 : vector<128x128xf32>
    %c0_6 = arith.constant 0 : index
    %c0_7 = arith.constant 0 : index
    %13 = vector.load %arg4[%c0_6, %c0_7] : memref<1x128xf32, #tpu.memory_space<vmem>>, vector<1x128xf32>
    %14 = vector.broadcast %13 : vector<1x128xf32> to vector<128x128xf32>
    %15 = arith.addf %12, %14 : vector<128x128xf32>
    %cst_8 = arith.constant 0.000000e+00 : f32
    %16 = vector.broadcast %cst_8 : f32 to vector<128x128xf32>
    %17 = arith.maximumf %15, %16 : vector<128x128xf32>
    %c0_9 = arith.constant 0 : index
    %c0_10 = arith.constant 0 : index
    %18 = vector.load %arg5[%c0_9, %c0_10] : memref<128x256xf32, #tpu.memory_space<vmem>>, vector<128x128xf32>
    tpu.vector_store %arg5[%c0_9, %c0_10], %17 {strides = array<i32>} : memref<128x256xf32, #tpu.memory_space<vmem>>, vector<128x128xf32>,
    %19 = arith.mulf %17, %17 : vector<128x128xf32>
    %c0_11 = arith.constant 0 : index
    %c128 = arith.constant 128 : index
    %20 = vector.load %arg5[%c0_11, %c128] : memref<128x256xf32, #tpu.memory_space<vmem>>, vector<128x128xf32>
    tpu.vector_store %arg5[%c0_11, %c128], %19 {strides = array<i32>} : memref<128x256xf32, #tpu.memory_space<vmem>>, vector<128x128xf32>,
    return
  }
  func.func @transform_0(%arg0: i32) -> (i32, i32) {
    %c0_i32 = arith.constant 0 : i32
    %c0_i32_0 = arith.constant 0 : i32
    return %arg0, %c0_i32 : i32, i32
  }
  func.func @transform_1(%arg0: i32) -> (i32, i32) {
    %c0_i32 = arith.constant 0 : i32
    %c0_i32_0 = arith.constant 0 : i32
    %c0_i32_1 = arith.constant 0 : i32
    return %c0_i32, %c0_i32_0 : i32, i32
  }
  func.func @transform_2(%arg0: i32) -> (i32, i32) {
    %c0_i32 = arith.constant 0 : i32
    %c0_i32_0 = arith.constant 0 : i32
    return %arg0, %c0_i32 : i32, i32
  }
  func.func @transform_3(%arg0: i32) -> (i32, i32) {
    %c0_i32 = arith.constant 0 : i32
    %c0_i32_0 = arith.constant 0 : i32
    %c0_i32_1 = arith.constant 0 : i32
    return %c0_i32, %c0_i32_0 : i32, i32
  }
  func.func @transform_4(%arg0: i32) -> (i32, i32) {
    %c0_i32 = arith.constant 0 : i32
    %c0_i32_0 = arith.constant 0 : i32
    return %arg0, %c0_i32 : i32, i32
  }
}

</mosaic_0001>

<llo_original>
// kernel: tpu_custom_call.1
$region0: #{tpu_custom_call.1}
  #allocation0 [shape = 'u32[]', space=smem, size = 0x4, offset = 0x4, fixed_abs, tag = 'smem constant byte address 0x4 - core index']
  #allocation1 [shape = 'u32[144,128]{1,0:T(1,128)}', space=vmem, size = 0x12000, scoped, tag = 'internal scratch']
  %s0 = inlined_call_operand.hbm [shape: f32[256,256], index: 0, kind: input, shape index: {}]
  %s1 = inlined_call_operand.vmem [shape: f32[256,128], index: 1, kind: input, shape index: {}]
  %s2 = inlined_call_operand.vmem [shape: f32[256,1], index: 2, kind: input, shape index: {}]
  %s3 = inlined_call_operand.vmem [shape: f32[1,128], index: 3, kind: input, shape index: {}]
  %s4 = inlined_call_operand.hbm [shape: f32[256,256], index: 4, kind: output, shape index: {}]
  %s5 = sld [smem:[#allocation0]]
  $region53: #{tpu_custom_call.1} parent=0
    _
  %s7 = ssub.s32 1, %s5
  %s8 = scalar_select 0, %s7, %s5
  $region1: #{tpu_custom_call.1} parent=0
    #allocation2 [shape = 'u8[262144]{0}', space=vmem, size = 0x40000, scoped, tag = 'input window, operand 0']
    #allocation3 [shape = 's32[2]{0}', space=sflag, size = 0x8, scoped, tag = 'scoped memory for tpu_custom_call.1']
    #allocation4 [shape = 's32[2]{0}', space=sflag, size = 0x8, scoped, tag = 'scoped memory for tpu_custom_call.1']
    #allocation5 [shape = 'u8[262144]{0}', space=vmem, size = 0x40000, scoped, tag = 'output window, operand 0']
    %9 = vsyncpa [#allocation3], 0
    %s10 = scalar_lea.sflag [#allocation3], 1
    %11 = vsyncpa %s10, 0
    %12 = vsyncpa [#allocation4], 0
    %s13 = scalar_lea.sflag [#allocation4], 1
    %14 = vsyncpa %s13, 0
    loop: start=0, step=1, limit=4
    $region2: #{tpu_custom_call.1} parent=1 // loop_pre_header
      _
    $region3: #{tpu_custom_call.1} parent=1 // loop_header
      %s16 = sphi 0, %s20
      %p17 = scmp.ge.s32.totalorder %s16, 4
      %s26 = sphi 0, %s28
      %s29 = sphi 0, %s26
      %s30 = sphi 0, %s29
      %s46 = sphi 0, %s30
      %s50 = sphi 0, %s50
      %s52 = sphi 0, %s50
      %s53 = sphi 0, %s52
      %s67 = sphi 0, %s53
      %s73 = sphi 0, %s75
      %s76 = sphi 0, %s73
      %s77 = sphi 0, %s76
      %s93 = sphi 0, %s77
      %s97 = sphi 0, %s97
      %s99 = sphi 0, %s97
      %s100 = sphi 0, %s99
      %s114 = sphi 0, %s100
      %s120 = sphi 0, %s122
      %s123 = sphi 0, %s120
      %s124 = sphi 0, %s123
      %s140 = sphi 0, %s124
    $region4: #{tpu_custom_call.1} parent=1 // loop_header_branch
      %19 = sbr.rel (%p17) target = $region8
    $region5: #{tpu_custom_call.1} parent=1 // loop_body
      %s21 = ssub.s32 %s16, 1
      %s22 = ssub.s32 %s16, 2
      %s23 = sadd.s32 %s16, 1
      %s24 = ssub.s32 %s16, %s23
      %p25 = scmp.eq.s32.totalorder %s24, 0
      %s27 = sadd.s32 %s26, 1
      %s28 = scalar_select %p25, %s26, %s27
      %p31 = pneg %p25
      %p32 = scmp.eq.s32.totalorder %s16, 1
      %p33 = por %p31, %p32
      %p34 = scmp.ne.s32.totalorder %s26, %s29
      %p35 = scmp.eq.s32.totalorder %s16, 0
      %p36 = por %p34, %p35
      %p37 = scmp.ne.s32.totalorder %s26, %s29
      %p38 = scmp.eq.s32.totalorder %s21, 1
      %p39 = por %p37, %p38
      %p40 = scmp.ne.s32.totalorder %s29, %s30
      %p41 = scmp.eq.s32.totalorder %s21, 0
      %p42 = por %p40, %p41
      %p43 = scmp.ne.s32.totalorder %s29, %s30
      %p44 = scmp.eq.s32.totalorder %s22, 1
      %p45 = por %p43, %p44
      %p47 = scmp.ne.s32.totalorder %s30, %s46
      %p48 = scmp.eq.s32.totalorder %s22, 0
      %p49 = por %p47, %p48
      %s51 = sadd.s32 %s50, 1
      %p54 = scmp.eq.s32.totalorder %s16, 1
      %p55 = scmp.ne.s32.totalorder %s50, %s52
      %p56 = scmp.eq.s32.totalorder %s16, 0
      %p57 = por %p55, %p56
      %p58 = scmp.ne.s32.totalorder %s50, %s52
      %p59 = scmp.eq.s32.totalorder %s21, 1
      %p60 = por %p58, %p59
      %p61 = scmp.ne.s32.totalorder %s52, %s53
      %p62 = scmp.eq.s32.totalorder %s21, 0
      %p63 = por %p61, %p62
      %p64 = scmp.ne.s32.totalorder %s52, %s53
      %p65 = scmp.eq.s32.totalorder %s22, 1
      %p66 = por %p64, %p65
      %p68 = scmp.ne.s32.totalorder %s53, %s67
      %p69 = scmp.eq.s32.totalorder %s22, 0
      %p70 = por %p68, %p69
      %s71 = ssub.s32 %s16, %s23
      %p72 = scmp.eq.s32.totalorder %s71, 0
      %s74 = sadd.s32 %s73, 1
      %s75 = scalar_select %p72, %s73, %s74
      %p78 = pneg %p72
      %p79 = scmp.eq.s32.totalorder %s16, 1
      %p80 = por %p78, %p79
      %p81 = scmp.ne.s32.totalorder %s73, %s76
      %p82 = scmp.eq.s32.totalorder %s16, 0
      %p83 = por %p81, %p82
      %p84 = scmp.ne.s32.totalorder %s73, %s76
      %p85 = scmp.eq.s32.totalorder %s21, 1
      %p86 = por %p84, %p85
      %p87 = scmp.ne.s32.totalorder %s76, %s77
      %p88 = scmp.eq.s32.totalorder %s21, 0
      %p89 = por %p87, %p88
      %p90 = scmp.ne.s32.totalorder %s76, %s77
      %p91 = scmp.eq.s32.totalorder %s22, 1
      %p92 = por %p90, %p91
      %p94 = scmp.ne.s32.totalorder %s77, %s93
      %p95 = scmp.eq.s32.totalorder %s22, 0
      %p96 = por %p94, %p95
      %s98 = sadd.s32 %s97, 1
      %p101 = scmp.eq.s32.totalorder %s16, 1
      %p102 = scmp.ne.s32.totalorder %s97, %s99
      %p103 = scmp.eq.s32.totalorder %s16, 0
      %p104 = por %p102, %p103
      %p105 = scmp.ne.s32.totalorder %s97, %s99
      %p106 = scmp.eq.s32.totalorder %s21, 1
      %p107 = por %p105, %p106
      %p108 = scmp.ne.s32.totalorder %s99, %s100
      %p109 = scmp.eq.s32.totalorder %s21, 0
      %p110 = por %p108, %p109
      %p111 = scmp.ne.s32.totalorder %s99, %s100
      %p112 = scmp.eq.s32.totalorder %s22, 1
      %p113 = por %p111, %p112
      %p115 = scmp.ne.s32.totalorder %s100, %s114
      %p116 = scmp.eq.s32.totalorder %s22, 0
      %p117 = por %p115, %p116
      %s118 = ssub.s32 %s16, %s23
      %p119 = scmp.eq.s32.totalorder %s118, 0
      %s121 = sadd.s32 %s120, 1
      %s122 = scalar_select %p119, %s120, %s121
      %p125 = pneg %p119
      %p126 = scmp.eq.s32.totalorder %s16, 1
      %p127 = por %p125, %p126
      %p128 = scmp.ne.s32.totalorder %s120, %s123
      %p129 = scmp.eq.s32.totalorder %s16, 0
      %p130 = por %p128, %p129
      %p131 = scmp.ne.s32.totalorder %s120, %s123
      %p132 = scmp.eq.s32.totalorder %s21, 1
      %p133 = por %p131, %p132
      %p134 = scmp.ne.s32.totalorder %s123, %s124
      %p135 = scmp.eq.s32.totalorder %s21, 0
      %p136 = por %p134, %p135
      %p137 = scmp.ne.s32.totalorder %s123, %s124
      %p138 = scmp.eq.s32.totalorder %s22, 1
      %p139 = por %p137, %p138
      %p141 = scmp.ne.s32.totalorder %s124, %s140
      %p142 = scmp.eq.s32.totalorder %s22, 0
      %p143 = por %p141, %p142
      %p144 = scmp.le.s32.totalorder 1, %s16
      %p145 = scmp.lt.s32.totalorder %s16, 3
      %p146 = pnand %p144, %p145
      %p147 = pneg %p146
      // Predicated region
      $region9: #{tpu_custom_call.1} parent=5 // pred_check
        _
      $region10: #{tpu_custom_call.1} parent=5 // pred_check_branch
        %149 = sbr.rel (%p146) target = $region12
      $region11: #{tpu_custom_call.1} parent=5 // pred_region
        %s150 = ssub.s32 %s16, 1
        // Predicated region
        $region13: #{tpu_custom_call.1} parent=11 // pred_check
          %p151 = pneg %p63
        $region14: #{tpu_custom_call.1} parent=11 // pred_check_branch
          %153 = sbr.rel (%p151) target = $region16
        $region15: #{tpu_custom_call.1} parent=11 // pred_region
          _
        $region16: #{tpu_custom_call.1} parent=11 // pred_fallthru
          _
        // Predicated region
        $region17: #{tpu_custom_call.1} parent=11 // pred_check
          %p154 = pneg %p110
        $region18: #{tpu_custom_call.1} parent=11 // pred_check_branch
          %156 = sbr.rel (%p154) target = $region20
        $region19: #{tpu_custom_call.1} parent=11 // pred_region
          _
        $region20: #{tpu_custom_call.1} parent=11 // pred_fallthru
          _
      $region12: #{tpu_custom_call.1} parent=5 // pred_fallthru
        _
      %p157 = scmp.lt.s32.totalorder %s16, 2
      // Predicated region
      $region21: #{tpu_custom_call.1} parent=5 // pred_check
        %p158 = pneg %p157
      $region22: #{tpu_custom_call.1} parent=5 // pred_check_branch
        %160 = sbr.rel (%p158) target = $region24
      $region23: #{tpu_custom_call.1} parent=5 // pred_region
        // Predicated region
        $region25: #{tpu_custom_call.1} parent=23 // pred_check
          %p161 = pneg %p36
        $region26: #{tpu_custom_call.1} parent=23 // pred_check_branch
          %163 = sbr.rel (%p161) target = $region28
        $region27: #{tpu_custom_call.1} parent=23 // pred_region
          %s164 = sand.u32 %s26, 1
          %s165 = scalar_lea.sflag [#allocation3], %s164
          %s166 = sand.u32 %s26, 1
          %s167 = smul.addr %s166, 256
          %s168 = scalar_lea.vmem [#allocation2], %s167
          %s169 = smul.u32 16, %s16
          %s171 = ssub.s32 4096, 4096
          %172 = vsyncadd %s165, %s171
          %s173 = smul.addr %s169, 2
          %s174 = smul.addr %s173, 128
          %s175 = scalar_lea.hbm %s0, %s174
          %s176 = sshll.u32 %s168, 4
          %s177 = int_to_ptr.vmem [resolvable:$true] %s176
          %182 = dma.hbm_to_vmem [thread:$0]  %s175, 4096, %s177, %s165, 256, 256, 16
        $region28: #{tpu_custom_call.1} parent=23 // pred_fallthru
          _
        // Predicated region
        $region29: #{tpu_custom_call.1} parent=23 // pred_check
          %p183 = pneg %p83
        $region30: #{tpu_custom_call.1} parent=23 // pred_check_branch
          %185 = sbr.rel (%p183) target = $region32
        $region31: #{tpu_custom_call.1} parent=23 // pred_region
          %s186 = smul.u32 16, %s16
          %p187 = scmp.lt.s32.totalorder %s186, 31
          %s188 = scalar_select %p187, %s186, 31
          %s189 = smul.addr %s188, 8
          %s190 = scalar_lea.vmem %s2, %s189
          %s191 = smul.u32 16, %s16
        $region32: #{tpu_custom_call.1} parent=23 // pred_fallthru
          _
      $region24: #{tpu_custom_call.1} parent=5 // pred_fallthru
        _
      %p192 = scmp.le.s32.totalorder 1, %s16
      %p193 = scmp.lt.s32.totalorder %s16, 3
      %p194 = pnand %p192, %p193
      %p195 = pneg %p194
      // Predicated region
      $region33: #{tpu_custom_call.1} parent=5 // pred_check
        _
      $region34: #{tpu_custom_call.1} parent=5 // pred_check_branch
        %197 = sbr.rel (%p194) target = $region36
      $region35: #{tpu_custom_call.1} parent=5 // pred_region
        %s198 = ssub.s32 %s16, 1
        %s199 = sand.u32 %s29, 1
        %s200 = scalar_lea.sflag [#allocation3], %s199
        %s201 = sand.u32 %s29, 1
        %s202 = smul.addr %s201, 256
        %s203 = scalar_lea.vmem [#allocation2], %s202
        // Predicated region
        $region37: #{tpu_custom_call.1} parent=35 // pred_check
          %p204 = pneg %p42
        $region38: #{tpu_custom_call.1} parent=35 // pred_check_branch
          %206 = sbr.rel (%p204) target = $region40
        $region39: #{tpu_custom_call.1} parent=35 // pred_region
          %207 = dma.done %s200, 4096
        $region40: #{tpu_custom_call.1} parent=35 // pred_fallthru
          _
        %s208 = sand.u32 %s29, 1
        %s209 = scalar_lea.sflag [#allocation3], %s208
        %s210 = sand.u32 %s29, 1
        %s211 = smul.addr %s210, 256
        %s212 = scalar_lea.vmem [#allocation2], %s211
        %p213 = pneg %p42
        %p214 = pneg %p39
        %p215 = pneg %p63
        %p216 = pneg %p60
        %s217 = smul.u32 16, %s21
        %p218 = scmp.lt.s32.totalorder %s217, 31
        %s219 = scalar_select %p218, %s217, 31
        %s220 = smul.addr %s219, 8
        %s221 = scalar_lea.vmem %s2, %s220
        %p222 = pneg %p89
        %p223 = pneg %p86
        %p224 = pneg %p110
        %p225 = pneg %p107
        %p226 = pneg %p136
        %p227 = pneg %p133
        %s228 = sand.u32 %s123, 1
        %s229 = scalar_lea.sflag [#allocation4], %s228
        %s230 = sand.u32 %s123, 1
        %s231 = smul.addr %s230, 256
        %s232 = scalar_lea.vmem [#allocation5], %s231
        %s233 = smul.u32 16, %s21
        %s234 = smul.u32 16, %s21
        %p235 = scmp.lt.s32.totalorder %s234, 31
        %s236 = scalar_select %p235, %s234, 31
        %s237 = smul.addr %s236, 8
        %s238 = scalar_lea.vmem %s2, %s237
        %s239 = smul.u32 16, %s21
        %s240 = smul.u32 16, %s21
        %v241 = vld [vmem:[%s203] sm:$0xff]
        %v242 = vld [vmem:[%s203 + $0x8] sm:$0xff]
        %v243 = vld [vmem:[%s203 + $0x10] sm:$0xff]
        %v244 = vld [vmem:[%s203 + $0x18] sm:$0xff]
        %v245 = vld [vmem:[%s203 + $0x20] sm:$0xff]
        %v246 = vld [vmem:[%s203 + $0x28] sm:$0xff]
        %v247 = vld [vmem:[%s203 + $0x30] sm:$0xff]
        %v248 = vld [vmem:[%s203 + $0x38] sm:$0xff]
        %v249 = vld [vmem:[%s203 + $0x40] sm:$0xff]
        %v250 = vld [vmem:[%s203 + $0x48] sm:$0xff]
        %v251 = vld [vmem:[%s203 + $0x50] sm:$0xff]
        %v252 = vld [vmem:[%s203 + $0x58] sm:$0xff]
        %v253 = vld [vmem:[%s203 + $0x60] sm:$0xff]
        %v254 = vld [vmem:[%s203 + $0x68] sm:$0xff]
        %v255 = vld [vmem:[%s203 + $0x70] sm:$0xff]
        %v256 = vld [vmem:[%s203 + $0x78] sm:$0xff]
        %v257 = vld [vmem:[%s203 + $0x80] sm:$0xff]
        %v258 = vld [vmem:[%s203 + $0x88] sm:$0xff]
        %v259 = vld [vmem:[%s203 + $0x90] sm:$0xff]
        %v260 = vld [vmem:[%s203 + $0x98] sm:$0xff]
        %v261 = vld [vmem:[%s203 + $0xa0] sm:$0xff]
        %v262 = vld [vmem:[%s203 + $0xa8] sm:$0xff]
        %v263 = vld [vmem:[%s203 + $0xb0] sm:$0xff]
        %v264 = vld [vmem:[%s203 + $0xb8] sm:$0xff]
        %v265 = vld [vmem:[%s203 + $0xc0] sm:$0xff]
        %v266 = vld [vmem:[%s203 + $0xc8] sm:$0xff]
        %v267 = vld [vmem:[%s203 + $0xd0] sm:$0xff]
        %v268 = vld [vmem:[%s203 + $0xd8] sm:$0xff]
        %v269 = vld [vmem:[%s203 + $0xe0] sm:$0xff]
        %v270 = vld [vmem:[%s203 + $0xe8] sm:$0xff]
        %v271 = vld [vmem:[%s203 + $0xf0] sm:$0xff]
        %v272 = vld [vmem:[%s203 + $0xf8] sm:$0xff]
        %v273 = vld [vmem:[%s1] sm:$0xff]
        %v274 = vld [vmem:[%s1 + $0x8] sm:$0xff]
        %v275 = vld [vmem:[%s1 + $0x10] sm:$0xff]
        %v276 = vld [vmem:[%s1 + $0x18] sm:$0xff]
        %v277 = vld [vmem:[%s1 + $0x20] sm:$0xff]
        %v278 = vld [vmem:[%s1 + $0x28] sm:$0xff]
        %v279 = vld [vmem:[%s1 + $0x30] sm:$0xff]
        %v280 = vld [vmem:[%s1 + $0x38] sm:$0xff]
        %v281 = vld [vmem:[%s1 + $0x40] sm:$0xff]
        %v282 = vld [vmem:[%s1 + $0x48] sm:$0xff]
        %v283 = vld [vmem:[%s1 + $0x50] sm:$0xff]
        %v284 = vld [vmem:[%s1 + $0x58] sm:$0xff]
        %v285 = vld [vmem:[%s1 + $0x60] sm:$0xff]
        %v286 = vld [vmem:[%s1 + $0x68] sm:$0xff]
        %v287 = vld [vmem:[%s1 + $0x70] sm:$0xff]
        %v288 = vld [vmem:[%s1 + $0x78] sm:$0xff]
        %v289 = vld [vmem:[%s1 + $0x80] sm:$0xff]
        %v290 = vld [vmem:[%s1 + $0x88] sm:$0xff]
        %v291 = vld [vmem:[%s1 + $0x90] sm:$0xff]
        %v292 = vld [vmem:[%s1 + $0x98] sm:$0xff]
        %v293 = vld [vmem:[%s1 + $0xa0] sm:$0xff]
        %v294 = vld [vmem:[%s1 + $0xa8] sm:$0xff]
        %v295 = vld [vmem:[%s1 + $0xb0] sm:$0xff]
        %v296 = vld [vmem:[%s1 + $0xb8] sm:$0xff]
        %v297 = vld [vmem:[%s1 + $0xc0] sm:$0xff]
        %v298 = vld [vmem:[%s1 + $0xc8] sm:$0xff]
        %v299 = vld [vmem:[%s1 + $0xd0] sm:$0xff]
        %v300 = vld [vmem:[%s1 + $0xd8] sm:$0xff]
        %v301 = vld [vmem:[%s1 + $0xe0] sm:$0xff]
        %v302 = vld [vmem:[%s1 + $0xe8] sm:$0xff]
        %v303 = vld [vmem:[%s1 + $0xf0] sm:$0xff]
        %v304 = vld [vmem:[%s1 + $0xf8] sm:$0xff]
        %305 = vmatprep.subr.mxu0 0.0
        %306 = vmatpush1.msra.mxu0 %v273
        %307 = vmatprep.subr.mxu0 0.0
        %308 = vmatpush1.msra.mxu0 %v274
        %309 = vmatprep.subr.mxu0 0.0
        %310 = vmatpush1.msra.mxu0 %v275
        %311 = vmatprep.subr.mxu0 0.0
        %312 = vmatpush1.msra.mxu0 %v276
        %313 = vmatprep.subr.mxu0 0.0
        %314 = vmatpush1.msra.mxu0 %v277
        %315 = vmatprep.subr.mxu0 0.0
        %316 = vmatpush1.msra.mxu0 %v278
        %317 = vmatprep.subr.mxu0 0.0
        %318 = vmatpush1.msra.mxu0 %v279
        %319 = vmatprep.subr.mxu0 0.0
        %320 = vmatpush1.msra.mxu0 %v280
        %321 = vmatprep.subr.mxu0 0.0
        %322 = vmatpush1.msra.mxu0 %v281
        %323 = vmatprep.subr.mxu0 0.0
        %324 = vmatpush1.msra.mxu0 %v282
        %325 = vmatprep.subr.mxu0 0.0
        %326 = vmatpush1.msra.mxu0 %v283
        %327 = vmatprep.subr.mxu0 0.0
        %328 = vmatpush1.msra.mxu0 %v284
        %329 = vmatprep.subr.mxu0 0.0
        %330 = vmatpush1.msra.mxu0 %v285
        %331 = vmatprep.subr.mxu0 0.0
        %332 = vmatpush1.msra.mxu0 %v286
        %333 = vmatprep.subr.mxu0 0.0
        %334 = vmatpush1.msra.mxu0 %v287
        %335 = vmatprep.subr.mxu0 0.0
        %336 = vmatpush1.msra.mxu0 %v288
        %337 = vmatprep.subr.mxu0 0.0
        %338 = vmatpush1.msra.mxu0 %v289
        %339 = vmatprep.subr.mxu0 0.0
        %340 = vmatpush1.msra.mxu0 %v290
        %341 = vmatprep.subr.mxu0 0.0
        %342 = vmatpush1.msra.mxu0 %v291
        %343 = vmatprep.subr.mxu0 0.0
        %344 = vmatpush1.msra.mxu0 %v292
        %345 = vmatprep.subr.mxu0 0.0
        %346 = vmatpush1.msra.mxu0 %v293
        %347 = vmatprep.subr.mxu0 0.0
        %348 = vmatpush1.msra.mxu0 %v294
        %349 = vmatprep.subr.mxu0 0.0
        %350 = vmatpush1.msra.mxu0 %v295
        %351 = vmatprep.subr.mxu0 0.0
        %352 = vmatpush1.msra.mxu0 %v296
        %353 = vmatprep.subr.mxu0 0.0
        %354 = vmatpush1.msra.mxu0 %v297
        %355 = vmatprep.subr.mxu0 0.0
        %356 = vmatpush1.msra.mxu0 %v298
        %357 = vmatprep.subr.mxu0 0.0
        %358 = vmatpush1.msra.mxu0 %v299
        %359 = vmatprep.subr.mxu0 0.0
        %360 = vmatpush1.msra.mxu0 %v300
        %361 = vmatprep.subr.mxu0 0.0
        %362 = vmatpush1.msra.mxu0 %v301
        %363 = vmatprep.subr.mxu0 0.0
        %364 = vmatpush1.msra.mxu0 %v302
        %365 = vmatprep.subr.mxu0 0.0
        %366 = vmatpush1.msra.mxu0 %v303
        %367 = vmatprep.subr.mxu0 0.0
        %368 = vmatpush1.msra.mxu0 %v304
        %369 = vmatprep.mubr.f32.mxu0 %v242
        %370 = vmatmul.mubr.f32.gmra.mrb[0].mxu0 %v241
        %v371 = vpop.f32.mrb[0].mxu0
        %v372 = vadd.f32 0.0, %v371
        %v373 = vpop.f32.mrb[0].mxu0
        %374 = vmatprep.mubr.f32.mxu0 %v244
        %375 = vmatmul.mubr.f32.gmra.mrb[0].mxu0 %v243
        %v376 = vpop.f32.mrb[0].mxu0
        %v377 = vadd.f32 0.0, %v376
        %v378 = vpop.f32.mrb[0].mxu0
        %379 = vmatprep.mubr.f32.mxu0 %v246
        %380 = vmatmul.mubr.f32.gmra.mrb[0].mxu0 %v245
        %v381 = vpop.f32.mrb[0].mxu0
        %v382 = vadd.f32 0.0, %v381
        %v383 = vpop.f32.mrb[0].mxu0
        %384 = vmatprep.mubr.f32.mxu0 %v248
        %385 = vmatmul.mubr.f32.gmra.mrb[0].mxu0 %v247
        %v386 = vpop.f32.mrb[0].mxu0
        %v387 = vadd.f32 0.0, %v386
        %v388 = vpop.f32.mrb[0].mxu0
        %389 = vmatprep.mubr.f32.mxu0 %v250
        %390 = vmatmul.mubr.f32.gmra.mrb[0].mxu0 %v249
        %v391 = vpop.f32.mrb[0].mxu0
        %v392 = vadd.f32 0.0, %v391
        %v393 = vpop.f32.mrb[0].mxu0
        %394 = vmatprep.mubr.f32.mxu0 %v252
        %395 = vmatmul.mubr.f32.gmra.mrb[0].mxu0 %v251
        %v396 = vpop.f32.mrb[0].mxu0
        %v397 = vadd.f32 0.0, %v396
        %v398 = vpop.f32.mrb[0].mxu0
        %399 = vmatprep.mubr.f32.mxu0 %v254
        %400 = vmatmul.mubr.f32.gmra.mrb[0].mxu0 %v253
        %v401 = vpop.f32.mrb[0].mxu0
        %v402 = vadd.f32 0.0, %v401
        %v403 = vpop.f32.mrb[0].mxu0
        %404 = vmatprep.mubr.f32.mxu0 %v256
        %405 = vmatmul.mubr.f32.gmra.mrb[0].mxu0 %v255
        %v406 = vpop.f32.mrb[0].mxu0
        %v407 = vadd.f32 0.0, %v406
        %v408 = vpop.f32.mrb[0].mxu0
        %409 = vmatprep.mubr.f32.mxu0 %v258
        %410 = vmatmul.mubr.f32.gmra.mrb[0].mxu0 %v257
        %v411 = vpop.f32.mrb[0].mxu0
        %v412 = vadd.f32 0.0, %v411
        %v413 = vpop.f32.mrb[0].mxu0
        %414 = vmatprep.mubr.f32.mxu0 %v260
        %415 = vmatmul.mubr.f32.gmra.mrb[0].mxu0 %v259
        %v416 = vpop.f32.mrb[0].mxu0
        %v417 = vadd.f32 0.0, %v416
        %v418 = vpop.f32.mrb[0].mxu0
        %419 = vmatprep.mubr.f32.mxu0 %v262
        %420 = vmatmul.mubr.f32.gmra.mrb[0].mxu0 %v261
        %v421 = vpop.f32.mrb[0].mxu0
        %v422 = vadd.f32 0.0, %v421
        %v423 = vpop.f32.mrb[0].mxu0
        %424 = vmatprep.mubr.f32.mxu0 %v264
        %425 = vmatmul.mubr.f32.gmra.mrb[0].mxu0 %v263
        %v426 = vpop.f32.mrb[0].mxu0
        %v427 = vadd.f32 0.0, %v426
        %v428 = vpop.f32.mrb[0].mxu0
        %429 = vmatprep.mubr.f32.mxu0 %v266
        %430 = vmatmul.mubr.f32.gmra.mrb[0].mxu0 %v265
        %v431 = vpop.f32.mrb[0].mxu0
        %v432 = vadd.f32 0.0, %v431
        %v433 = vpop.f32.mrb[0].mxu0
        %434 = vmatprep.mubr.f32.mxu0 %v268
        %435 = vmatmul.mubr.f32.gmra.mrb[0].mxu0 %v267
        %v436 = vpop.f32.mrb[0].mxu0
        %v437 = vadd.f32 0.0, %v436
        %v438 = vpop.f32.mrb[0].mxu0
        %439 = vmatprep.mubr.f32.mxu0 %v270
        %440 = vmatmul.mubr.f32.gmra.mrb[0].mxu0 %v269
        %v441 = vpop.f32.mrb[0].mxu0
        %v442 = vadd.f32 0.0, %v441
        %v443 = vpop.f32.mrb[0].mxu0
        %444 = vmatprep.mubr.f32.mxu0 %v272
        %445 = vmatmul.mubr.f32.gmra.mrb[0].mxu0 %v271
        %v446 = vpop.f32.mrb[0].mxu0
        %v447 = vadd.f32 0.0, %v446
        %v448 = vpop.f32.mrb[0].mxu0
        %449 = vdwg.mxu0
        %s450 = smul.u32 %s21, 128
        %s451 = scalar_lea.vmem %s1, %s450
        %v452 = vld [vmem:[%s451] sm:$0xff]
        %v453 = vld [vmem:[%s451 + $0x8] sm:$0xff]
        %v454 = vld [vmem:[%s451 + $0x10] sm:$0xff]
        %v455 = vld [vmem:[%s451 + $0x18] sm:$0xff]
        %v456 = vld [vmem:[%s451 + $0x20] sm:$0xff]
        %v457 = vld [vmem:[%s451 + $0x28] sm:$0xff]
        %v458 = vld [vmem:[%s451 + $0x30] sm:$0xff]
        %v459 = vld [vmem:[%s451 + $0x38] sm:$0xff]
        %v460 = vld [vmem:[%s451 + $0x40] sm:$0xff]
        %v461 = vld [vmem:[%s451 + $0x48] sm:$0xff]
        %v462 = vld [vmem:[%s451 + $0x50] sm:$0xff]
        %v463 = vld [vmem:[%s451 + $0x58] sm:$0xff]
        %v464 = vld [vmem:[%s451 + $0x60] sm:$0xff]
        %v465 = vld [vmem:[%s451 + $0x68] sm:$0xff]
        %v466 = vld [vmem:[%s451 + $0x70] sm:$0xff]
        %v467 = vld [vmem:[%s451 + $0x78] sm:$0xff]
        %v468 = vld [vmem:[%s238] sm:$0xff]
        %v469 = vld [vmem:[%s238 + $0x8] sm:$0xff]
        %v470 = vld [vmem:[%s238 + $0x10] sm:$0xff]
        %v471 = vld [vmem:[%s238 + $0x18] sm:$0xff]
        %v472 = vld [vmem:[%s238 + $0x20] sm:$0xff]
        %v473 = vld [vmem:[%s238 + $0x28] sm:$0xff]
        %v474 = vld [vmem:[%s238 + $0x30] sm:$0xff]
        %v475 = vld [vmem:[%s238 + $0x38] sm:$0xff]
        %v476 = vld [vmem:[%s238 + $0x40] sm:$0xff]
        %v477 = vld [vmem:[%s238 + $0x48] sm:$0xff]
        %v478 = vld [vmem:[%s238 + $0x50] sm:$0xff]
        %v479 = vld [vmem:[%s238 + $0x58] sm:$0xff]
        %v480 = vld [vmem:[%s238 + $0x60] sm:$0xff]
        %v481 = vld [vmem:[%s238 + $0x68] sm:$0xff]
        %v482 = vld [vmem:[%s238 + $0x70] sm:$0xff]
        %v483 = vld [vmem:[%s238 + $0x78] sm:$0xff]
        %485 = vset.pattern.permute.xlu0 0
        %486 = vperm.xlu0 %485, %v468
        %v487 = vpop.permute.xlu0 %486
        %490 = vset.pattern.permute.xlu0 0
        %491 = vperm.xlu0 %490, %v469
        %v492 = vpop.permute.xlu0 %491
        %495 = vset.pattern.permute.xlu0 0
        %496 = vperm.xlu0 %495, %v470
        %v497 = vpop.permute.xlu0 %496
        %500 = vset.pattern.permute.xlu0 0
        %501 = vperm.xlu0 %500, %v471
        %v502 = vpop.permute.xlu0 %501
        %505 = vset.pattern.permute.xlu0 0
        %506 = vperm.xlu0 %505, %v472
        %v507 = vpop.permute.xlu0 %506
        %510 = vset.pattern.permute.xlu0 0
        %511 = vperm.xlu0 %510, %v473
        %v512 = vpop.permute.xlu0 %511
        %515 = vset.pattern.permute.xlu0 0
        %516 = vperm.xlu0 %515, %v474
        %v517 = vpop.permute.xlu0 %516
        %520 = vset.pattern.permute.xlu0 0
        %521 = vperm.xlu0 %520, %v475
        %v522 = vpop.permute.xlu0 %521
        %525 = vset.pattern.permute.xlu0 0
        %526 = vperm.xlu0 %525, %v476
        %v527 = vpop.permute.xlu0 %526
        %530 = vset.pattern.permute.xlu0 0
        %531 = vperm.xlu0 %530, %v477
        %v532 = vpop.permute.xlu0 %531
        %535 = vset.pattern.permute.xlu0 0
        %536 = vperm.xlu0 %535, %v478
        %v537 = vpop.permute.xlu0 %536
        %540 = vset.pattern.permute.xlu0 0
        %541 = vperm.xlu0 %540, %v479
        %v542 = vpop.permute.xlu0 %541
        %545 = vset.pattern.permute.xlu0 0
        %546 = vperm.xlu0 %545, %v480
        %v547 = vpop.permute.xlu0 %546
        %550 = vset.pattern.permute.xlu0 0
        %551 = vperm.xlu0 %550, %v481
        %v552 = vpop.permute.xlu0 %551
        %555 = vset.pattern.permute.xlu0 0
        %556 = vperm.xlu0 %555, %v482
        %v557 = vpop.permute.xlu0 %556
        %560 = vset.pattern.permute.xlu0 0
        %561 = vperm.xlu0 %560, %v483
        %v562 = vpop.permute.xlu0 %561
        %v564 = vmul.f32 %v487, %v372
        %v565 = vmul.f32 %v492, %v377
        %v566 = vmul.f32 %v497, %v382
        %v567 = vmul.f32 %v502, %v387
        %v568 = vmul.f32 %v507, %v392
        %v569 = vmul.f32 %v512, %v397
        %v570 = vmul.f32 %v517, %v402
        %v571 = vmul.f32 %v522, %v407
        %v572 = vmul.f32 %v527, %v412
        %v573 = vmul.f32 %v532, %v417
        %v574 = vmul.f32 %v537, %v422
        %v575 = vmul.f32 %v542, %v427
        %v576 = vmul.f32 %v547, %v432
        %v577 = vmul.f32 %v552, %v437
        %v578 = vmul.f32 %v557, %v442
        %v579 = vmul.f32 %v562, %v447
        %v580 = vmul.f32 %v487, %v452
        %v581 = vmul.f32 %v492, %v453
        %v582 = vmul.f32 %v497, %v454
        %v583 = vmul.f32 %v502, %v455
        %v584 = vmul.f32 %v507, %v456
        %v585 = vmul.f32 %v512, %v457
        %v586 = vmul.f32 %v517, %v458
        %v587 = vmul.f32 %v522, %v459
        %v588 = vmul.f32 %v527, %v460
        %v589 = vmul.f32 %v532, %v461
        %v590 = vmul.f32 %v537, %v462
        %v591 = vmul.f32 %v542, %v463
        %v592 = vmul.f32 %v547, %v464
        %v593 = vmul.f32 %v552, %v465
        %v594 = vmul.f32 %v557, %v466
        %v595 = vmul.f32 %v562, %v467
        %v596 = vadd.f32 %v564, %v580
        %v597 = vadd.f32 %v565, %v581
        %v598 = vadd.f32 %v566, %v582
        %v599 = vadd.f32 %v567, %v583
        %v600 = vadd.f32 %v568, %v584
        %v601 = vadd.f32 %v569, %v585
        %v602 = vadd.f32 %v570, %v586
        %v603 = vadd.f32 %v571, %v587
        %v604 = vadd.f32 %v572, %v588
        %v605 = vadd.f32 %v573, %v589
        %v606 = vadd.f32 %v574, %v590
        %v607 = vadd.f32 %v575, %v591
        %v608 = vadd.f32 %v576, %v592
        %v609 = vadd.f32 %v577, %v593
        %v610 = vadd.f32 %v578, %v594
        %v611 = vadd.f32 %v579, %v595
        %v612 = vld [vmem:[%s3] sm:$0x1]
        %v614 = vlaneseq
        %v615 = vshrl.u32 %v614, 7
        %v616 = vsub.s32 0, %v615
        %v617 = vrot.slane %v612, %v616
        %v619 = vadd.f32 %v596, %v617
        %v620 = vadd.f32 %v597, %v617
        %v621 = vadd.f32 %v598, %v617
        %v622 = vadd.f32 %v599, %v617
        %v623 = vadd.f32 %v600, %v617
        %v624 = vadd.f32 %v601, %v617
        %v625 = vadd.f32 %v602, %v617
        %v626 = vadd.f32 %v603, %v617
        %v627 = vadd.f32 %v604, %v617
        %v628 = vadd.f32 %v605, %v617
        %v629 = vadd.f32 %v606, %v617
        %v630 = vadd.f32 %v607, %v617
        %v631 = vadd.f32 %v608, %v617
        %v632 = vadd.f32 %v609, %v617
        %v633 = vadd.f32 %v610, %v617
        %v634 = vadd.f32 %v611, %v617
        %v635 = vmax.f32 %v619, 0.0
        %v636 = vmax.f32 %v620, 0.0
        %v637 = vmax.f32 %v621, 0.0
        %v638 = vmax.f32 %v622, 0.0
        %v639 = vmax.f32 %v623, 0.0
        %v640 = vmax.f32 %v624, 0.0
        %v641 = vmax.f32 %v625, 0.0
        %v642 = vmax.f32 %v626, 0.0
        %v643 = vmax.f32 %v627, 0.0
        %v644 = vmax.f32 %v628, 0.0
        %v645 = vmax.f32 %v629, 0.0
        %v646 = vmax.f32 %v630, 0.0
        %v647 = vmax.f32 %v631, 0.0
        %v648 = vmax.f32 %v632, 0.0
        %v649 = vmax.f32 %v633, 0.0
        %v650 = vmax.f32 %v634, 0.0
        %651 = vst [vmem:[%s232] sm:$0xff] %v635
        %652 = vst [vmem:[%s232 + $0x10] sm:$0xff] %v636
        %653 = vst [vmem:[%s232 + $0x20] sm:$0xff] %v637
        %654 = vst [vmem:[%s232 + $0x30] sm:$0xff] %v638
        %655 = vst [vmem:[%s232 + $0x40] sm:$0xff] %v639
        %656 = vst [vmem:[%s232 + $0x50] sm:$0xff] %v640
        %657 = vst [vmem:[%s232 + $0x60] sm:$0xff] %v641
        %658 = vst [vmem:[%s232 + $0x70] sm:$0xff] %v642
        %659 = vst [vmem:[%s232 + $0x80] sm:$0xff] %v643
        %660 = vst [vmem:[%s232 + $0x90] sm:$0xff] %v644
        %661 = vst [vmem:[%s232 + $0xa0] sm:$0xff] %v645
        %662 = vst [vmem:[%s232 + $0xb0] sm:$0xff] %v646
        %663 = vst [vmem:[%s232 + $0xc0] sm:$0xff] %v647
        %664 = vst [vmem:[%s232 + $0xd0] sm:$0xff] %v648
        %665 = vst [vmem:[%s232 + $0xe0] sm:$0xff] %v649
        %666 = vst [vmem:[%s232 + $0xf0] sm:$0xff] %v650
        %v667 = vmul.f32 %v635, %v635
        %v668 = vmul.f32 %v636, %v636
        %v669 = vmul.f32 %v637, %v637
        %v670 = vmul.f32 %v638, %v638
        %v671 = vmul.f32 %v639, %v639
        %v672 = vmul.f32 %v640, %v640
        %v673 = vmul.f32 %v641, %v641
        %v674 = vmul.f32 %v642, %v642
        %v675 = vmul.f32 %v643, %v643
        %v676 = vmul.f32 %v644, %v644
        %v677 = vmul.f32 %v645, %v645
        %v678 = vmul.f32 %v646, %v646
        %v679 = vmul.f32 %v647, %v647
        %v680 = vmul.f32 %v648, %v648
        %v681 = vmul.f32 %v649, %v649
        %v682 = vmul.f32 %v650, %v650
        %683 = vst [vmem:[%s232 + $0x8] sm:$0xff] %v667
        %684 = vst [vmem:[%s232 + $0x18] sm:$0xff] %v668
        %685 = vst [vmem:[%s232 + $0x28] sm:$0xff] %v669
        %686 = vst [vmem:[%s232 + $0x38] sm:$0xff] %v670
        %687 = vst [vmem:[%s232 + $0x48] sm:$0xff] %v671
        %688 = vst [vmem:[%s232 + $0x58] sm:$0xff] %v672
        %689 = vst [vmem:[%s232 + $0x68] sm:$0xff] %v673
        %690 = vst [vmem:[%s232 + $0x78] sm:$0xff] %v674
        %691 = vst [vmem:[%s232 + $0x88] sm:$0xff] %v675
        %692 = vst [vmem:[%s232 + $0x98] sm:$0xff] %v676
        %693 = vst [vmem:[%s232 + $0xa8] sm:$0xff] %v677
        %694 = vst [vmem:[%s232 + $0xb8] sm:$0xff] %v678
        %695 = vst [vmem:[%s232 + $0xc8] sm:$0xff] %v679
        %696 = vst [vmem:[%s232 + $0xd8] sm:$0xff] %v680
        %697 = vst [vmem:[%s232 + $0xe8] sm:$0xff] %v681
        %698 = vst [vmem:[%s232 + $0xf8] sm:$0xff] %v682
        %s699 = sand.u32 %s123, 1
        %s700 = scalar_lea.sflag [#allocation4], %s699
        %s701 = sand.u32 %s123, 1
        %s702 = smul.addr %s701, 256
        %s703 = scalar_lea.vmem [#allocation5], %s702
        // Predicated region
        $region41: #{tpu_custom_call.1} parent=35 // pred_check
          %p704 = pneg %p133
        $region42: #{tpu_custom_call.1} parent=35 // pred_check_branch
          %706 = sbr.rel (%p704) target = $region44
        $region43: #{tpu_custom_call.1} parent=35 // pred_region
          %s707 = smul.u32 16, %s21
          %s709 = ssub.s32 4096, 4096
          %710 = vsyncadd %s700, %s709
          %s711 = smul.addr %s707, 2
          %s712 = smul.addr %s711, 128
          %s713 = scalar_lea.hbm %s4, %s712
          %s714 = sshll.u32 %s703, 4
          %s715 = int_to_ptr.vmem [resolvable:$true] %s714
          %720 = dma.vmem_to_hbm [thread:$0]  %s715, 4096, %s713, %s700, 256, 256, 16
        $region44: #{tpu_custom_call.1} parent=35 // pred_fallthru
          _
      $region36: #{tpu_custom_call.1} parent=5 // pred_fallthru
        _
      %p721 = scmp.le.s32.totalorder 2, %s16
      // Predicated region
      $region45: #{tpu_custom_call.1} parent=5 // pred_check
        %p722 = pneg %p721
      $region46: #{tpu_custom_call.1} parent=5 // pred_check_branch
        %724 = sbr.rel (%p722) target = $region48
      $region47: #{tpu_custom_call.1} parent=5 // pred_region
        %s725 = ssub.s32 %s16, 2
        // Predicated region
        $region49: #{tpu_custom_call.1} parent=47 // pred_check
          %p726 = pneg %p139
        $region50: #{tpu_custom_call.1} parent=47 // pred_check_branch
          %728 = sbr.rel (%p726) target = $region52
        $region51: #{tpu_custom_call.1} parent=47 // pred_region
          %s729 = sand.u32 %s124, 1
          %s730 = scalar_lea.sflag [#allocation4], %s729
          %s731 = sand.u32 %s124, 1
          %s732 = smul.addr %s731, 256
          %s733 = scalar_lea.vmem [#allocation5], %s732
          %734 = dma.done %s730, 4096
        $region52: #{tpu_custom_call.1} parent=47 // pred_fallthru
          _
      $region48: #{tpu_custom_call.1} parent=5 // pred_fallthru
        _
    $region6: #{tpu_custom_call.1} parent=1 // loop_footer
      %s20 = sadd.s32 1, %s16
    $region7: #{tpu_custom_call.1} parent=1 // loop_footer_branch
      %15 = sbr.rel target = $region3
    $region8: #{tpu_custom_call.1} parent=1 // loop_exit
      _
    %735 = vsyncpa [#allocation3], 1
    %s736 = scalar_lea.sflag [#allocation3], 1
    %737 = vsyncpa %s736, 1
    %738 = vsyncpa [#allocation4], 1
    %s739 = scalar_lea.sflag [#allocation4], 1
    %740 = vsyncpa %s739, 1

</llo_original>
